<compile_context>
chip_gen: v7x
topology: tpu7x:2x2x1
jax: 0.10.0
libtpu: 0.0.40
codegen_flags: <defaults>
</compile_context>

<pallas_src>
import jax
import jax.numpy as jnp
from jax.experimental import pallas as pl
from jax.experimental.pallas import tpu as pltpu


_TM_TARGET = 2048                       # row-tile target (review: sweep 2048-4096)
_VMEM_LIMIT_BYTES = 32 * 1024 * 1024    # scoped-VMEM limit handed to Mosaic
_VMEM_BUDGET_FRACTION = 0.5             # fraction of the limit our buffers may use


def _round_up(v, m):
    return ((v + m - 1) // m) * m


def _choose_row_tile(M, F, O, act_itemsize, out_itemsize):
    """Row tile size for the matmul grid.

    - Big enough that the ~0.35us per-grid-step overhead is negligible.
    - Small enough that double-buffered activation + double-buffered output
      + resident weight/bias fit the VMEM budget (lane-padding aware), so the
      same formula holds on v7x's 64 MiB generation.
    - Even number of row tiles so dimension_semantics=("parallel",) splits the
      work evenly across v7x's 2 TensorCores.
    """
    f_lanes = _round_up(F, 128)          # activation last dim, lane-padded in VMEM
    o_lanes = _round_up(O, 128)          # output/weight last dim, lane-padded in VMEM
    budget = int(_VMEM_LIMIT_BYTES * _VMEM_BUDGET_FRACTION)
    resident = _round_up(F, 16) * o_lanes * act_itemsize + o_lanes * 4   # W + bias
    per_row = 2 * f_lanes * act_itemsize + 2 * o_lanes * out_itemsize    # dbl-buffered
    tm_cap = max(64, (budget - resident) // max(per_row, 1))
    tm_cap = min(_TM_TARGET, tm_cap)

    if M <= tm_cap:
        return M                          # single full-extent block (always legal)

    n_tiles = pl.cdiv(M, tm_cap)
    if n_tiles % 2:
        n_tiles += 1                      # even tile count -> balanced on 2 TCs
    tm = _round_up(pl.cdiv(M, n_tiles), 16)   # multiple of 16: (8,128)-legal, bf16-friendly
    return min(tm, M)


# ---------------------------------------------------------------------------
# Pallas kernel: fused matmul + bias   (the nn.Linear hot path)
# ---------------------------------------------------------------------------
def _spiral_linear_kernel(x_ref, w_ref, b_ref, o_ref):
    # x_ref: (TM, F)  gathered spiral features (compute dtype, e.g. bf16)
    # w_ref: (F, O)   Linear weight, transposed, VMEM-resident
    # b_ref: (1, O)   float32 bias, VMEM-resident
    # o_ref: (TM, O)  unpadded output tile
    acc = jnp.dot(x_ref[...], w_ref[...], preferred_element_type=jnp.float32)
    o_ref[...] = (acc + b_ref[...]).astype(o_ref.dtype)


def spiral_linear(x_flat, w_t, bias_2d, out_dtype=jnp.float32):
    """x_flat: (M, F), w_t: (F, O), bias_2d: (1, O) -> (M, O) in out_dtype."""
    M, F = x_flat.shape
    F_w, O = w_t.shape
    assert F == F_w, (F, F_w)
    act_itemsize = jnp.dtype(x_flat.dtype).itemsize
    out_itemsize = jnp.dtype(out_dtype).itemsize

    tm = _choose_row_tile(M, F, O, act_itemsize, out_itemsize)
    grid = (pl.cdiv(M, tm),)

    cost = pl.CostEstimate(
        flops=2 * M * F * O,
        transcendentals=0,
        bytes_accessed=(M * F * act_itemsize                       # activation read
                        + F * O * jnp.dtype(w_t.dtype).itemsize    # resident weight read
                        + O * 4                                    # bias read
                        + M * O * out_itemsize),                   # unpadded output write
    )

    return pl.pallas_call(
        _spiral_linear_kernel,
        out_shape=jax.ShapeDtypeStruct((M, O), out_dtype),
        grid=grid,
        in_specs=[
            pl.BlockSpec((tm, F), lambda i: (i, 0)),     # activation row tiles (pipelined)
            pl.BlockSpec((F, O), lambda i: (0, 0)),      # weight, stays resident
            pl.BlockSpec((1, O), lambda i: (0, 0)),      # bias, stays resident
        ],
        out_specs=pl.BlockSpec((tm, O), lambda i: (i, 0)),
        compiler_params=pltpu.CompilerParams(
            dimension_semantics=("parallel",),           # 2 TCs on v7x
            vmem_limit_bytes=_VMEM_LIMIT_BYTES,
        ),
        cost_estimate=cost,
    )(x_flat, w_t, bias_2d)


# ---------------------------------------------------------------------------
# One-time parameter preparation (keep transpose / cast off the hot path)
# ---------------------------------------------------------------------------
def prepare_linear_params(weight, bias, compute_dtype=jnp.bfloat16):
    """
    weight : (out_channels, in_channels*seq_length)  -- PyTorch Linear layout
    bias   : (out_channels,)
    Returns (w_t, bias_2d, out_channels):
      w_t     : (F, O) compute-dtype transposed weight (no lane padding)
      bias_2d : (1, O) float32
    """
    O, _F = weight.shape
    w_t = weight.T.astype(compute_dtype)
    bias_2d = bias.reshape(1, O).astype(jnp.float32)
    return w_t, bias_2d, O


# ---------------------------------------------------------------------------
# SpiralConv forward
# ---------------------------------------------------------------------------
def spiral_conv_forward(x, indices, w_t, bias_2d, out_dtype=jnp.float32):
    """
    x       : (bs, n_nodes, in_channels) or (n_nodes, in_channels) float
    indices : (n_nodes, seq_length) int32
    w_t     : (in_channels*seq_length, out_channels) from prepare_linear_params
    bias_2d : (1, out_channels) float32
    Returns : (bs, n_nodes, out_channels) or (n_nodes, out_channels) in out_dtype
    """
    n_nodes, _seq_length = indices.shape
    flat_idx = indices.reshape(-1)
    compute_dtype = w_t.dtype
    out_channels = w_t.shape[1]

    # Cast x to the compute dtype *before* the gather so the XLA-materialized
    # (M, s*C) intermediate is half-size; the convert fuses into the gather.
    # TODO(synk): fuse this gather into the Pallas kernel (scalar-prefetched
    # indices + VMEM-resident x) once an in-kernel row gather lowers reliably.
    xc = x.astype(compute_dtype)

    if x.ndim == 2:
        g = jnp.take(xc, flat_idx, axis=0).reshape(n_nodes, -1)          # (n, s*C)
        return spiral_linear(g, w_t, bias_2d, out_dtype)                 # (n, O)
    elif x.ndim == 3:
        bs = x.shape[0]
        g = jnp.take(xc, flat_idx, axis=1).reshape(bs * n_nodes, -1)     # (bs*n, s*C)
        out = spiral_linear(g, w_t, bias_2d, out_dtype)                  # (bs*n, O)
        return out.reshape(bs, n_nodes, out_channels)
    else:
        raise RuntimeError("x.dim() is expected to be 2 or 3")


# ---------------------------------------------------------------------------
# Deterministic parameter init (xavier_uniform weight, zero bias) -- as in torch
# ---------------------------------------------------------------------------
def init_params(key, in_channels, out_channels, seq_length):
    in_features = in_channels * seq_length
    # torch.nn.init.xavier_uniform_: U(-a, a), a = sqrt(6 / (fan_in + fan_out))
    a = jnp.sqrt(6.0 / (in_features + out_channels))
    weight = jax.random.uniform(
        key, (out_channels, in_features), minval=-a, maxval=a, dtype=jnp.float32
    )
    bias = jnp.zeros((out_channels,), dtype=jnp.float32)
    return weight, bias


if __name__ == "__main__":
    key = jax.random.PRNGKey(0)
    k_x, k_idx, k_w = jax.random.split(key, 3)

    bs = 2
    n_nodes = 16
    seq_length = 8
    in_channels = 4
    out_channels = 32

    x = jax.random.normal(k_x, (bs, n_nodes, in_channels), dtype=jnp.float32)
    indices = jax.random.randint(
        k_idx, (n_nodes, seq_length), minval=0, maxval=n_nodes, dtype=jnp.int32
    )
    weight, bias = init_params(k_w, in_channels, out_channels, seq_length)

    # One-time prep: transpose + compute-dtype cast of the Linear params.
    w_t, bias_2d, _ = prepare_linear_params(weight, bias, compute_dtype=jnp.bfloat16)

    fwd = jax.jit(lambda xx: spiral_conv_forward(xx, indices, w_t, bias_2d))
    out = jax.block_until_ready(fwd(x))

    # Pure-JAX float32 reference.  Tolerance loosened to account for the bf16
    # MXU operands (f32 accumulation); error is ~1e-3 relative at these shapes.
    g = jnp.take(x, indices.reshape(-1), axis=1).reshape(bs, n_nodes, -1)
    ref = jnp.einsum("bnf,of->bno", g, weight) + bias
    assert out.shape == (bs, n_nodes, out_channels)
    max_err = float(jnp.max(jnp.abs(out - ref)))
    assert jnp.allclose(out, ref, atol=5e-2, rtol=5e-2), max_err

    print("KERNEL_OK")
</pallas_src>

<mosaic_0001>
module attributes {stable_mosaic.version = 11 : i64} {
  func.func @_spiral_linear_kernel(%arg0: i32, %arg1: memref<32x32xbf16, #tpu.memory_space<vmem>>, %arg2: memref<32x32xbf16, #tpu.memory_space<vmem>>, %arg3: memref<1x32xf32, #tpu.memory_space<vmem>>, %arg4: memref<32x32xf32, #tpu.memory_space<vmem>>) attributes {dimension_semantics = [#tpu.dimension_semantics<parallel>], iteration_bounds = array<i64: 1>, scalar_prefetch = 0 : i64, scratch_operands = 0 : i64, tpu.core_type = #tpu.core_type<tc>, window_params = [{transform_indices = @transform_0, window_bounds = array<i64: 32, 32>}, {pipeline_mode = #tpu.pipeline_mode<synchronous>, transform_indices = @transform_1, window_bounds = array<i64: 32, 32>}, {pipeline_mode = #tpu.pipeline_mode<synchronous>, transform_indices = @transform_2, window_bounds = array<i64: 1, 32>}, {transform_indices = @transform_3, window_bounds = array<i64: 32, 32>}]} {
    %c0 = arith.constant 0 : index
    %c0_0 = arith.constant 0 : index
    %0 = vector.load %arg1[%c0, %c0_0] : memref<32x32xbf16, #tpu.memory_space<vmem>>, vector<32x32xbf16>
    %c0_1 = arith.constant 0 : index
    %c0_2 = arith.constant 0 : index
    %1 = vector.load %arg2[%c0_1, %c0_2] : memref<32x32xbf16, #tpu.memory_space<vmem>>, vector<32x32xbf16>
    %cst = arith.constant dense<0.000000e+00> : vector<32x32xf32>
    %2 = tpu.matmul %0, %1, %cst {dimension_numbers = #tpu.dot_dimension_numbers<[1], [0], [0], [1], [0, 0, 1, 1], [], []>} : vector<32x32xbf16>, vector<32x32xbf16>, vector<32x32xf32> -> vector<32x32xf32>
    %c0_3 = arith.constant 0 : index
    %c0_4 = arith.constant 0 : index
    %3 = vector.load %arg3[%c0_3, %c0_4] : memref<1x32xf32, #tpu.memory_space<vmem>>, vector<1x32xf32>
    %4 = vector.broadcast %3 : vector<1x32xf32> to vector<32x32xf32>
    %5 = arith.addf %2, %4 : vector<32x32xf32>
    %c0_5 = arith.constant 0 : index
    %c0_6 = arith.constant 0 : index
    %6 = vector.load %arg4[%c0_5, %c0_6] : memref<32x32xf32, #tpu.memory_space<vmem>>, vector<32x32xf32>
    tpu.vector_store %arg4[%c0_5, %c0_6], %5 {strides = array<i32>} : memref<32x32xf32, #tpu.memory_space<vmem>>, vector<32x32xf32>,
    return
  }
  func.func @transform_0(%arg0: i32) -> (i32, i32) {
    %c0_i32 = arith.constant 0 : i32
    %c0_i32_0 = arith.constant 0 : i32
    return %arg0, %c0_i32 : i32, i32
  }
  func.func @transform_1(%arg0: i32) -> (i32, i32) {
    %c0_i32 = arith.constant 0 : i32
    %c0_i32_0 = arith.constant 0 : i32
    %c0_i32_1 = arith.constant 0 : i32
    return %c0_i32, %c0_i32_0 : i32, i32
  }
  func.func @transform_2(%arg0: i32) -> (i32, i32) {
    %c0_i32 = arith.constant 0 : i32
    %c0_i32_0 = arith.constant 0 : i32
    %c0_i32_1 = arith.constant 0 : i32
    return %c0_i32, %c0_i32_0 : i32, i32
  }
  func.func @transform_3(%arg0: i32) -> (i32, i32) {
    %c0_i32 = arith.constant 0 : i32
    %c0_i32_0 = arith.constant 0 : i32
    return %arg0, %c0_i32 : i32, i32
  }
}

</mosaic_0001>

<llo_original>
// kernel: _lambda_.1
$region0: #{_lambda_.1}
  #allocation0 [shape = 'u32[]', space=smem, size = 0x4, offset = 0x4, fixed_abs, tag = 'smem constant byte address 0x4 - core index']
  #allocation1 [shape = 'u32[144,128]{1,0:T(1,128)}', space=vmem, size = 0x12000, scoped, tag = 'internal scratch']
  %s0 = inlined_call_operand.vmem [shape: bf16[32,32], index: 0, kind: input, shape index: {}]
  %s1 = inlined_call_operand.vmem [shape: bf16[32,32], index: 1, kind: input, shape index: {}]
  %s2 = inlined_call_operand.vmem [shape: f32[1,32], index: 2, kind: input, shape index: {}]
  %s3 = inlined_call_operand.hbm [shape: f32[32,32], index: 3, kind: output, shape index: {}]
  %s4 = sld [smem:[#allocation0]]
  $region22: #{_lambda_.1} parent=0
    _
  %s6 = ssub.s32 1, %s4
  %s7 = scalar_select 0, %s6, %s4
  $region1: #{_lambda_.1} parent=0
    #allocation2 [shape = 'u8[16384]{0}', space=vmem, size = 0x4000, scoped, tag = 'output window, operand 0, single buffered']
    #allocation3 [shape = 's32[1]{0}', space=sflag, size = 0x4, scoped, tag = 'scoped memory for _lambda_.1']
    %8 = vsyncpa [#allocation3], 0
    // Predicated region
    $region2: #{_lambda_.1} parent=1 // pred_check
      _
    $region3: #{_lambda_.1} parent=1 // pred_check_branch
      %10 = sbr.rel (0) target = $region5
    $region4: #{_lambda_.1} parent=1 // pred_region
      _
    $region5: #{_lambda_.1} parent=1 // pred_fallthru
      _
    // Predicated region
    $region6: #{_lambda_.1} parent=1 // pred_check
      _
    $region7: #{_lambda_.1} parent=1 // pred_check_branch
      %12 = sbr.rel (0) target = $region9
    $region8: #{_lambda_.1} parent=1 // pred_region
      _
    $region9: #{_lambda_.1} parent=1 // pred_fallthru
      _
    // Predicated region
    $region10: #{_lambda_.1} parent=1 // pred_check
      _
    $region11: #{_lambda_.1} parent=1 // pred_check_branch
      %14 = sbr.rel (0) target = $region13
    $region12: #{_lambda_.1} parent=1 // pred_region
      _
    $region13: #{_lambda_.1} parent=1 // pred_fallthru
      _
    %v16 = vld [vmem:[%s0] sm:$0xf]
    %v17 = vld [vmem:[%s0 + $0x4] sm:$0xf]
    %v18 = vld [vmem:[%s0 + $0x8] sm:$0xf]
    %v19 = vld [vmem:[%s0 + $0xc] sm:$0xf]
    %v20 = vld [vmem:[%s1] sm:$0xf]
    %v21 = vld [vmem:[%s1 + $0x4] sm:$0xf]
    %v22 = vld [vmem:[%s1 + $0x8] sm:$0xf]
    %v23 = vld [vmem:[%s1 + $0xc] sm:$0xf]
    %v24 = vld [vmem:[%s2] sm:$0x1]
    %v26 = vlaneseq
    %v27 = vshrl.u32 %v26, 7
    %v28 = vsub.s32 0, %v27
    %v29 = vrot.slane %v24, %v28
    %v35 = vunpack.c.l.b16 %v16
    %v36 = vunpack.c.l.b16 %v17
    %v37 = vunpack.c.l.b16 %v18
    %v38 = vunpack.c.l.b16 %v19
    %v39 = vpack.c.b16 %v36, %v35
    %v40 = vpack.c.b16 %v38, %v37
    %v45 = vunpack.c.l.b16 %v20
    %v46 = vunpack.c.l.b16 %v21
    %v47 = vunpack.c.l.b16 %v22
    %v48 = vunpack.c.l.b16 %v23
    %v49 = vpack.c.b16 %v46, %v45
    %v50 = vpack.c.b16 %v48, %v47
    %vm53 = vcmask 261120
    %v55 = vsel %vm53, %v39, 0
    %v58 = vsel %vm53, %v40, 0
    %60 = vmatprep.subr.bf16.mxu0 0
    %61 = vmatpush1.bf16.msra.mxu0 %v49
    %62 = vmatprep.subr.bf16.mxu0 0
    %63 = vmatpush1.bf16.msra.mxu0 %v50
    %64 = vmatprep.subr.bf16.mxu0 0
    %65 = vmatpush1.bf16.msra.mxu0 0
    %66 = vmatprep.subr.bf16.mxu0 0
    %67 = vmatpush1.bf16.msra.mxu0 0
    %68 = vmatprep.subr.bf16.mxu0 0
    %69 = vmatpush1.bf16.msra.mxu0 0
    %70 = vmatprep.subr.bf16.mxu0 0
    %71 = vmatpush1.bf16.msra.mxu0 0
    %72 = vmatprep.subr.bf16.mxu0 0
    %73 = vmatpush1.bf16.msra.mxu0 0
    %74 = vmatprep.subr.bf16.mxu0 0
    %75 = vmatpush1.bf16.msra.mxu0 0
    %76 = vmatprep.subr.bf16.mxu0 0
    %77 = vmatpush1.bf16.msra.mxu0 0
    %78 = vmatprep.subr.bf16.mxu0 0
    %79 = vmatpush1.bf16.msra.mxu0 0
    %80 = vmatprep.subr.bf16.mxu0 0
    %81 = vmatpush1.bf16.msra.mxu0 0
    %82 = vmatprep.subr.bf16.mxu0 0
    %83 = vmatpush1.bf16.msra.mxu0 0
    %84 = vmatprep.subr.bf16.mxu0 0
    %85 = vmatpush1.bf16.msra.mxu0 0
    %86 = vmatprep.subr.bf16.mxu0 0
    %87 = vmatpush1.bf16.msra.mxu0 0
    %88 = vmatprep.subr.bf16.mxu0 0
    %89 = vmatpush1.bf16.msra.mxu0 0
    %90 = vmatprep.subr.bf16.mxu0 0
    %91 = vmatpush1.bf16.msra.mxu0 0
    %92 = vmatprep.mubr.bf16.mxu0 0
    %93 = vmatmul.mubr.bf16.gmra.mrb[0].mxu0 %v55
    %v94 = vpop.f32.mrb[0].mxu0
    %v95 = vadd.f32 %v29, %v94
    %v96 = vpop.f32.mrb[0].mxu0
    %v97 = vpop.f32.mrb[0].mxu0
    %v98 = vadd.f32 %v29, %v97
    %v99 = vpop.f32.mrb[0].mxu0
    %100 = vmatprep.mubr.bf16.mxu0 0
    %101 = vmatmul.mubr.bf16.gmra.mrb[0].mxu0 %v58
    %v102 = vpop.f32.mrb[0].mxu0
    %v103 = vadd.f32 %v29, %v102
    %v104 = vpop.f32.mrb[0].mxu0
    %v105 = vpop.f32.mrb[0].mxu0
    %v106 = vadd.f32 %v29, %v105
    %v107 = vpop.f32.mrb[0].mxu0
    %108 = vdwg.mxu0
    %109 = vst.msk [vmem:[#allocation2] sm:$0xff] %vm53, %v95
    %110 = vst.msk [vmem:[#allocation2 + $0x8] sm:$0xff] %vm53, %v98
    %111 = vst.msk [vmem:[#allocation2 + $0x10] sm:$0xff] %vm53, %v103
    %112 = vst.msk [vmem:[#allocation2 + $0x18] sm:$0xff] %vm53, %v106
    // Predicated region
    $region14: #{_lambda_.1} parent=1 // pred_check
      _
    $region15: #{_lambda_.1} parent=1 // pred_check_branch
      %114 = sbr.rel (0) target = $region17
    $region16: #{_lambda_.1} parent=1 // pred_region
      %s116 = ssub.s32 512, 512
      %117 = vsyncadd [#allocation3], %s116
      %s118 = sshll.u32 [#allocation2], 4
      %s119 = int_to_ptr.vmem [resolvable:$true] %s118
      %124 = dma.vmem_to_hbm [thread:$0]  %s119, 512, %s3, [#allocation3], 128, 128, 8
    $region17: #{_lambda_.1} parent=1 // pred_fallthru
      _
    // Predicated region
    $region18: #{_lambda_.1} parent=1 // pred_check
      _
    $region19: #{_lambda_.1} parent=1 // pred_check_branch
      %126 = sbr.rel (0) target = $region21
    $region20: #{_lambda_.1} parent=1 // pred_region
      %127 = dma.done [#allocation3], 512
    $region21: #{_lambda_.1} parent=1 // pred_fallthru
      _
    %128 = vsyncpa [#allocation3], 1

</llo_original>
